<compile_context>
chip_gen: v7x
topology: tpu7x:2x2x1
jax: 0.10.0
libtpu: 0.0.40
codegen_flags: <defaults>
</compile_context>

<pallas_src>
import jax
import jax.numpy as jnp
from jax.experimental import pallas as pl
from jax.experimental.pallas import tpu as pltpu

# Model hyperparameters. Linear(96, ...) in the module forces the conv/pool
# chain to end at 16 channels x 6 positions, i.e. n_features in {30..33}.
TIME_STEPS = 8        # Conv1d in_channels
N_FEATURES = 30       # Conv1d input length and final output width
HID = 2 * N_FEATURES  # dense_1 output width (60)
B = 2                 # batch

C1 = 16               # conv channels
K = 3                 # conv kernel size
L0 = N_FEATURES       # 30
L1 = L0 - K + 1       # 28 : conv1 output length
P1 = L1 // 2          # 14 : pool1 output length
L2 = P1 - K + 1       # 12 : conv2 output length
P2 = L2 // 2          # 6  : pool2 output length
FLAT = C1 * P2        # 96 : flatten width (must match Linear(96, ...))
H2_ROWS = B * P1 - K + 1   # 26 : rows of the batch-flattened conv2 output


def _align8(n):
    return (n + 7) // 8 * 8


# Row offsets inside the packed parameter slab (all 8-aligned sublane offsets).
R_W1 = 0                                    # (24, 16)
R_W2 = _align8(R_W1 + K * TIME_STEPS)       # 24  : tap k at R_W2 + k*C1, each (16, 16)
R_WD1 = _align8(R_W2 + K * C1)              # 72  : (96, 60)
R_WD2 = _align8(R_WD1 + FLAT)               # 168 : (60, 30)
R_E1E = _align8(R_WD2 + HID)                # 232 : (28, 56)
R_E1O = _align8(R_E1E + B * P1)             # 264 : (28, 56)
R_E2E = _align8(R_E1O + B * P1)             # 296 : (12, 26)
R_E2O = _align8(R_E2E + B * P2)             # 312 : (12, 26)
R_B = _align8(R_E2O + B * P2)               # 328 : rows b1, b2, bd1, bd2
SLAB_ROWS = _align8(R_B + 4)                # 336
SLAB_LANES = 128


def deepant_kernel(x_ref, p_ref, out_ref):
    f32 = jnp.float32

    w1 = p_ref[R_W1:R_W1 + K * TIME_STEPS, 0:C1]            # (24, 16)
    wd1 = p_ref[R_WD1:R_WD1 + FLAT, 0:HID]                  # (96, 60)
    wd2 = p_ref[R_WD2:R_WD2 + HID, 0:N_FEATURES]            # (60, 30)
    e1e = p_ref[R_E1E:R_E1E + B * P1, 0:B * L1]             # (28, 56)
    e1o = p_ref[R_E1O:R_E1O + B * P1, 0:B * L1]             # (28, 56)
    e2e = p_ref[R_E2E:R_E2E + B * P2, 0:H2_ROWS]            # (12, 26)
    e2o = p_ref[R_E2O:R_E2O + B * P2, 0:H2_ROWS]            # (12, 26)
    bias = p_ref[R_B:R_B + 4, :]                            # (4, 128)
    b1 = bias[0:1, 0:C1]
    b2 = bias[1:2, 0:C1]
    bd1 = bias[2:3, 0:HID]
    bd2 = bias[3:4, 0:N_FEATURES]

    # ---- Conv1d(time_steps -> 16, k=3, valid) + ReLU: single matmul (im2col'd) ----
    h1 = jnp.dot(x_ref[...], w1, preferred_element_type=f32) + b1      # (56, 16)
    h1 = jnp.maximum(h1, 0.0)

    # ---- MaxPool1d(2): even/odd row selection on the MXU (in-register) ----
    p1 = jnp.maximum(jnp.dot(e1e, h1, preferred_element_type=f32),
                     jnp.dot(e1o, h1, preferred_element_type=f32))     # (28, 16)

    # ---- Conv1d(16 -> 16, k=3, valid) + ReLU: 3 tap matmuls over flattened batch ----
    # Rows 12..13 straddle the batch boundary (junk) but are never selected below.
    h2 = jnp.dot(p1[0:H2_ROWS, :], p_ref[R_W2:R_W2 + C1, 0:C1],
                 preferred_element_type=f32)
    h2 = h2 + jnp.dot(p1[1:1 + H2_ROWS, :], p_ref[R_W2 + C1:R_W2 + 2 * C1, 0:C1],
                      preferred_element_type=f32)
    h2 = h2 + jnp.dot(p1[2:2 + H2_ROWS, :], p_ref[R_W2 + 2 * C1:R_W2 + 3 * C1, 0:C1],
                      preferred_element_type=f32)
    h2 = jnp.maximum(h2 + b2, 0.0)                                     # (26, 16)

    # ---- MaxPool1d(2) + junk-row drop; output row r = 2*l + b ----
    p2 = jnp.maximum(jnp.dot(e2e, h2, preferred_element_type=f32),
                     jnp.dot(e2o, h2, preferred_element_type=f32))     # (12, 16)

    # ---- Flatten to (B, 96): column block l = rows [2l, 2l+2) of p2, giving
    #      flat index 16*l + c, which matches the pre-permuted wd1 layout. ----
    flat = jnp.concatenate([p2[2 * l:2 * l + 2, :] for l in range(P2)], axis=1)  # (2, 96)

    # ---- Linear(96 -> 60) + ReLU. Dropout(p=0.25) is identity in eval mode. ----
    # TODO(synk): training-mode dropout (random mask + 1/(1-p) scale) not implemented.
    y1 = jnp.maximum(jnp.dot(flat, wd1, preferred_element_type=f32) + bd1, 0.0)  # (2, 60)

    # ---- Linear(60 -> 30), single batched store ----
    out_ref[...] = jnp.dot(y1, wd2, preferred_element_type=f32) + bd2            # (2, 30)


def _pool_selectors():
    """0/1 matrices implementing MaxPool1d(2) row selection. The pool-2 pair also
    drops batch-boundary junk rows and orders output rows as r = 2*l + b so the
    flatten becomes a simple lane-concat of contiguous 2-row slices."""
    j1 = jnp.arange(B * L1)[None, :]
    i1 = jnp.arange(B * P1)[:, None]
    e1e = (j1 == 2 * i1).astype(jnp.float32)                 # (28, 56)
    e1o = (j1 == 2 * i1 + 1).astype(jnp.float32)

    r = jnp.arange(B * P2)                                   # output row r = 2*l + b
    src = (P1 * (r % 2) + 2 * (r // 2))[:, None]             # h2 row 14*b + 2*l
    j2 = jnp.arange(H2_ROWS)[None, :]
    e2e = (j2 == src).astype(jnp.float32)                    # (12, 26)
    e2o = (j2 == src + 1).astype(jnp.float32)
    return e1e, e1o, e2e, e2o


def _pack_params(params):
    """Pack all weights/biases/pool selectors into one lane-padded f32 slab (1 DMA)."""
    w1, b1, w2, b2, wd1, bd1, wd2, bd2 = params

    w1_r = jnp.transpose(w1, (2, 1, 0)).reshape(K * TIME_STEPS, C1)   # (24, 16)
    w2_r = jnp.transpose(w2, (2, 1, 0))                               # (K, 16, 16)
    # PyTorch Flatten is channel-major (index c*P2 + l); kernel flat index is 16*l + c.
    wd1_r = jnp.transpose(wd1.reshape(HID, C1, P2), (2, 1, 0)).reshape(FLAT, HID)
    wd2_r = wd2.T                                                     # (60, 30)
    e1e, e1o, e2e, e2o = _pool_selectors()

    slab = jnp.zeros((SLAB_ROWS, SLAB_LANES), jnp.float32)

    def put(s, row, block):
        return s.at[row:row + block.shape[0], 0:block.shape[1]].set(block)

    slab = put(slab, R_W1, w1_r)
    for k in range(K):
        slab = put(slab, R_W2 + k * C1, w2_r[k])
    slab = put(slab, R_WD1, wd1_r)
    slab = put(slab, R_WD2, wd2_r)
    slab = put(slab, R_E1E, e1e)
    slab = put(slab, R_E1O, e1o)
    slab = put(slab, R_E2E, e2e)
    slab = put(slab, R_E2O, e2o)
    slab = put(slab, R_B + 0, b1.reshape(1, C1))
    slab = put(slab, R_B + 1, b2.reshape(1, C1))
    slab = put(slab, R_B + 2, bd1.reshape(1, HID))
    slab = put(slab, R_B + 3, bd2.reshape(1, N_FEATURES))
    return slab


def _im2col_conv1(x):
    """(B, TS, L0) -> (B*L1, K*TS): conv1 becomes a single 24-deep matmul."""
    x_t = jnp.transpose(x, (0, 2, 1))                                  # (B, L0, TS)
    cols = jnp.concatenate([x_t[:, k:k + L1, :] for k in range(K)], axis=2)
    return cols.reshape(B * L1, K * TIME_STEPS)


@jax.jit
def deepant2d_forward(x, params):
    """x: (B, time_steps, n_features) float32 (PyTorch NCW). Returns (B, n_features)."""
    x1 = _im2col_conv1(x)
    slab = _pack_params(params)
    vmem = pl.BlockSpec(memory_space=pltpu.MemorySpace.VMEM)
    return pl.pallas_call(
        deepant_kernel,
        out_shape=jax.ShapeDtypeStruct((B, N_FEATURES), jnp.float32),
        in_specs=[vmem, vmem],
        out_specs=vmem,
    )(x1, slab)


def deepant2d_reference(x, params):
    """Pure-JAX reference mirroring the PyTorch forward (eval mode)."""
    w1, b1, w2, b2, wd1, bd1, wd2, bd2 = params

    def conv1d(h, w, bias):
        kk = w.shape[-1]
        lout = h.shape[-1] - kk + 1
        out = jnp.zeros((h.shape[0], w.shape[0], lout), jnp.float32)
        for k in range(kk):
            out = out + jnp.einsum('bcl,oc->bol', h[:, :, k:k + lout], w[:, :, k])
        return out + bias[None, :, None]

    def maxpool2(h):
        ln = (h.shape[-1] // 2) * 2
        return jnp.maximum(h[:, :, 0:ln:2], h[:, :, 1:ln:2])

    h = jax.nn.relu(conv1d(x, w1, b1))
    h = maxpool2(h)
    h = jax.nn.relu(conv1d(h, w2, b2))
    h = maxpool2(h)
    h = h.reshape(h.shape[0], -1)            # PyTorch Flatten order: (c, l)
    h = jax.nn.relu(h @ wd1.T + bd1)
    return h @ wd2.T + bd2                   # dropout = identity (eval)


if __name__ == "__main__":
    key = jax.random.PRNGKey(0)
    kx, *kp = jax.random.split(key, 10)

    x = jax.random.normal(kx, (B, TIME_STEPS, N_FEATURES), jnp.float32)

    # Deterministic synthetic parameters (shapes from the module's __init__).
    params = (
        0.1 * jax.random.normal(kp[0], (C1, TIME_STEPS, K), jnp.float32),   # conv1d_1 weight
        0.1 * jax.random.normal(kp[1], (C1,), jnp.float32),                 # conv1d_1 bias
        0.1 * jax.random.normal(kp[2], (C1, C1, K), jnp.float32),           # conv1d_2 weight
        0.1 * jax.random.normal(kp[3], (C1,), jnp.float32),                 # conv1d_2 bias
        0.1 * jax.random.normal(kp[4], (HID, FLAT), jnp.float32),           # dense_1 weight
        0.1 * jax.random.normal(kp[5], (HID,), jnp.float32),                # dense_1 bias
        0.1 * jax.random.normal(kp[6], (N_FEATURES, HID), jnp.float32),     # dense_2 weight
        0.1 * jax.random.normal(kp[7], (N_FEATURES,), jnp.float32),         # dense_2 bias
    )

    out = jax.block_until_ready(deepant2d_forward(x, params))
    ref = jax.block_until_ready(deepant2d_reference(x, params))

    assert out.shape == (B, N_FEATURES), out.shape
    # Tolerance covers MXU default-precision f32 matmuls (bf16 input passes).
    max_err = float(jnp.max(jnp.abs(out - ref)))
    assert max_err < 2e-2, f"max abs error too large: {max_err}"

    print("KERNEL_OK")
</pallas_src>

<mosaic_0001>
module attributes {stable_mosaic.version = 11 : i64} {
  func.func @deepant_kernel(%arg0: memref<56x24xf32, #tpu.memory_space<vmem>>, %arg1: memref<336x128xf32, #tpu.memory_space<vmem>>, %arg2: memref<2x30xf32, #tpu.memory_space<vmem>>) attributes {dimension_semantics = [], scalar_prefetch = 0 : i64, scratch_operands = 0 : i64, tpu.core_type = #tpu.core_type<tc>} {
    %c0 = arith.constant 0 : index
    %c0_0 = arith.constant 0 : index
    %0 = vector.load %arg1[%c0, %c0_0] : memref<336x128xf32, #tpu.memory_space<vmem>>, vector<24x16xf32>
    %c72 = arith.constant 72 : index
    %c0_1 = arith.constant 0 : index
    %1 = vector.load %arg1[%c72, %c0_1] : memref<336x128xf32, #tpu.memory_space<vmem>>, vector<96x60xf32>
    %c168 = arith.constant 168 : index
    %c0_2 = arith.constant 0 : index
    %2 = vector.load %arg1[%c168, %c0_2] : memref<336x128xf32, #tpu.memory_space<vmem>>, vector<60x30xf32>
    %c232 = arith.constant 232 : index
    %c0_3 = arith.constant 0 : index
    %3 = vector.load %arg1[%c232, %c0_3] : memref<336x128xf32, #tpu.memory_space<vmem>>, vector<28x56xf32>
    %c264 = arith.constant 264 : index
    %c0_4 = arith.constant 0 : index
    %4 = vector.load %arg1[%c264, %c0_4] : memref<336x128xf32, #tpu.memory_space<vmem>>, vector<28x56xf32>
    %c296 = arith.constant 296 : index
    %c0_5 = arith.constant 0 : index
    %5 = vector.load %arg1[%c296, %c0_5] : memref<336x128xf32, #tpu.memory_space<vmem>>, vector<12x26xf32>
    %c312 = arith.constant 312 : index
    %c0_6 = arith.constant 0 : index
    %6 = vector.load %arg1[%c312, %c0_6] : memref<336x128xf32, #tpu.memory_space<vmem>>, vector<12x26xf32>
    %c328 = arith.constant 328 : index
    %c0_7 = arith.constant 0 : index
    %7 = vector.load %arg1[%c328, %c0_7] : memref<336x128xf32, #tpu.memory_space<vmem>>, vector<4x128xf32>
    %8 = vector.extract_strided_slice %7 {offsets = [0, 0], sizes = [1, 16], strides = [1, 1]} : vector<4x128xf32> to vector<1x16xf32>
    %9 = vector.extract_strided_slice %7 {offsets = [1, 0], sizes = [1, 16], strides = [1, 1]} : vector<4x128xf32> to vector<1x16xf32>
    %10 = vector.extract_strided_slice %7 {offsets = [2, 0], sizes = [1, 60], strides = [1, 1]} : vector<4x128xf32> to vector<1x60xf32>
    %11 = vector.extract_strided_slice %7 {offsets = [3, 0], sizes = [1, 30], strides = [1, 1]} : vector<4x128xf32> to vector<1x30xf32>
    %c0_8 = arith.constant 0 : index
    %c0_9 = arith.constant 0 : index
    %12 = vector.load %arg0[%c0_8, %c0_9] : memref<56x24xf32, #tpu.memory_space<vmem>>, vector<56x24xf32>
    %cst = arith.constant dense<0.000000e+00> : vector<56x16xf32>
    %13 = tpu.matmul %12, %0, %cst {dimension_numbers = #tpu.dot_dimension_numbers<[1], [0], [0], [1], [0, 0, 1, 1], [], []>} : vector<56x24xf32>, vector<24x16xf32>, vector<56x16xf32> -> vector<56x16xf32>
    %14 = vector.broadcast %8 : vector<1x16xf32> to vector<56x16xf32>
    %15 = arith.addf %13, %14 : vector<56x16xf32>
    %cst_10 = arith.constant 0.000000e+00 : f32
    %16 = vector.broadcast %cst_10 : f32 to vector<56x16xf32>
    %17 = arith.maximumf %15, %16 : vector<56x16xf32>
    %cst_11 = arith.constant dense<0.000000e+00> : vector<28x16xf32>
    %18 = tpu.matmul %3, %17, %cst_11 {dimension_numbers = #tpu.dot_dimension_numbers<[1], [0], [0], [1], [0, 0, 1, 1], [], []>} : vector<28x56xf32>, vector<56x16xf32>, vector<28x16xf32> -> vector<28x16xf32>
    %cst_12 = arith.constant dense<0.000000e+00> : vector<28x16xf32>
    %19 = tpu.matmul %4, %17, %cst_12 {dimension_numbers = #tpu.dot_dimension_numbers<[1], [0], [0], [1], [0, 0, 1, 1], [], []>} : vector<28x56xf32>, vector<56x16xf32>, vector<28x16xf32> -> vector<28x16xf32>
    %20 = arith.maximumf %18, %19 : vector<28x16xf32>
    %21 = vector.extract_strided_slice %20 {offsets = [0, 0], sizes = [26, 16], strides = [1, 1]} : vector<28x16xf32> to vector<26x16xf32>
    %c24 = arith.constant 24 : index
    %c0_13 = arith.constant 0 : index
    %22 = vector.load %arg1[%c24, %c0_13] : memref<336x128xf32, #tpu.memory_space<vmem>>, vector<16x16xf32>
    %cst_14 = arith.constant dense<0.000000e+00> : vector<26x16xf32>
    %23 = tpu.matmul %21, %22, %cst_14 {dimension_numbers = #tpu.dot_dimension_numbers<[1], [0], [0], [1], [0, 0, 1, 1], [], []>} : vector<26x16xf32>, vector<16x16xf32>, vector<26x16xf32> -> vector<26x16xf32>
    %24 = vector.extract_strided_slice %20 {offsets = [1, 0], sizes = [26, 16], strides = [1, 1]} : vector<28x16xf32> to vector<26x16xf32>
    %c40 = arith.constant 40 : index
    %c0_15 = arith.constant 0 : index
    %25 = vector.load %arg1[%c40, %c0_15] : memref<336x128xf32, #tpu.memory_space<vmem>>, vector<16x16xf32>
    %cst_16 = arith.constant dense<0.000000e+00> : vector<26x16xf32>
    %26 = tpu.matmul %24, %25, %cst_16 {dimension_numbers = #tpu.dot_dimension_numbers<[1], [0], [0], [1], [0, 0, 1, 1], [], []>} : vector<26x16xf32>, vector<16x16xf32>, vector<26x16xf32> -> vector<26x16xf32>
    %27 = arith.addf %23, %26 : vector<26x16xf32>
    %28 = vector.extract_strided_slice %20 {offsets = [2, 0], sizes = [26, 16], strides = [1, 1]} : vector<28x16xf32> to vector<26x16xf32>
    %c56 = arith.constant 56 : index
    %c0_17 = arith.constant 0 : index
    %29 = vector.load %arg1[%c56, %c0_17] : memref<336x128xf32, #tpu.memory_space<vmem>>, vector<16x16xf32>
    %cst_18 = arith.constant dense<0.000000e+00> : vector<26x16xf32>
    %30 = tpu.matmul %28, %29, %cst_18 {dimension_numbers = #tpu.dot_dimension_numbers<[1], [0], [0], [1], [0, 0, 1, 1], [], []>} : vector<26x16xf32>, vector<16x16xf32>, vector<26x16xf32> -> vector<26x16xf32>
    %31 = arith.addf %27, %30 : vector<26x16xf32>
    %32 = vector.broadcast %9 : vector<1x16xf32> to vector<26x16xf32>
    %33 = arith.addf %31, %32 : vector<26x16xf32>
    %cst_19 = arith.constant 0.000000e+00 : f32
    %34 = vector.broadcast %cst_19 : f32 to vector<26x16xf32>
    %35 = arith.maximumf %33, %34 : vector<26x16xf32>
    %cst_20 = arith.constant dense<0.000000e+00> : vector<12x16xf32>
    %36 = tpu.matmul %5, %35, %cst_20 {dimension_numbers = #tpu.dot_dimension_numbers<[1], [0], [0], [1], [0, 0, 1, 1], [], []>} : vector<12x26xf32>, vector<26x16xf32>, vector<12x16xf32> -> vector<12x16xf32>
    %cst_21 = arith.constant dense<0.000000e+00> : vector<12x16xf32>
    %37 = tpu.matmul %6, %35, %cst_21 {dimension_numbers = #tpu.dot_dimension_numbers<[1], [0], [0], [1], [0, 0, 1, 1], [], []>} : vector<12x26xf32>, vector<26x16xf32>, vector<12x16xf32> -> vector<12x16xf32>
    %38 = arith.maximumf %36, %37 : vector<12x16xf32>
    %39 = vector.extract_strided_slice %38 {offsets = [0, 0], sizes = [2, 16], strides = [1, 1]} : vector<12x16xf32> to vector<2x16xf32>
    %40 = vector.extract_strided_slice %38 {offsets = [2, 0], sizes = [2, 16], strides = [1, 1]} : vector<12x16xf32> to vector<2x16xf32>
    %41 = vector.extract_strided_slice %38 {offsets = [4, 0], sizes = [2, 16], strides = [1, 1]} : vector<12x16xf32> to vector<2x16xf32>
    %42 = vector.extract_strided_slice %38 {offsets = [6, 0], sizes = [2, 16], strides = [1, 1]} : vector<12x16xf32> to vector<2x16xf32>
    %43 = vector.extract_strided_slice %38 {offsets = [8, 0], sizes = [2, 16], strides = [1, 1]} : vector<12x16xf32> to vector<2x16xf32>
    %44 = vector.extract_strided_slice %38 {offsets = [10, 0], sizes = [2, 16], strides = [1, 1]} : vector<12x16xf32> to vector<2x16xf32>
    %45 = tpu.concatenate %39, %40, %41, %42, %43, %44 in 1 : vector<2x16xf32>, vector<2x16xf32>, vector<2x16xf32>, vector<2x16xf32>, vector<2x16xf32>, vector<2x16xf32> -> vector<2x96xf32>
    %cst_22 = arith.constant dense<0.000000e+00> : vector<2x60xf32>
    %46 = tpu.matmul %45, %1, %cst_22 {dimension_numbers = #tpu.dot_dimension_numbers<[1], [0], [0], [1], [0, 0, 1, 1], [], []>} : vector<2x96xf32>, vector<96x60xf32>, vector<2x60xf32> -> vector<2x60xf32>
    %47 = vector.broadcast %10 : vector<1x60xf32> to vector<2x60xf32>
    %48 = arith.addf %46, %47 : vector<2x60xf32>
    %cst_23 = arith.constant 0.000000e+00 : f32
    %49 = vector.broadcast %cst_23 : f32 to vector<2x60xf32>
    %50 = arith.maximumf %48, %49 : vector<2x60xf32>
    %cst_24 = arith.constant dense<0.000000e+00> : vector<2x30xf32>
    %51 = tpu.matmul %50, %2, %cst_24 {dimension_numbers = #tpu.dot_dimension_numbers<[1], [0], [0], [1], [0, 0, 1, 1], [], []>} : vector<2x60xf32>, vector<60x30xf32>, vector<2x30xf32> -> vector<2x30xf32>
    %52 = vector.broadcast %11 : vector<1x30xf32> to vector<2x30xf32>
    %53 = arith.addf %51, %52 : vector<2x30xf32>
    %c0_25 = arith.constant 0 : index
    %c0_26 = arith.constant 0 : index
    %54 = vector.load %arg2[%c0_25, %c0_26] : memref<2x30xf32, #tpu.memory_space<vmem>>, vector<2x30xf32>
    tpu.vector_store %arg2[%c0_25, %c0_26], %53 {strides = array<i32>} : memref<2x30xf32, #tpu.memory_space<vmem>>, vector<2x30xf32>,
    return
  }
}

</mosaic_0001>

<llo_original>
// kernel: deepant2d_forward.1
$region0: #{deepant2d_forward.1}
  #allocation0 [shape = 'u32[]', space=smem, size = 0x4, offset = 0x4, fixed_abs, tag = 'smem constant byte address 0x4 - core index']
  #allocation1 [shape = 'u32[144,128]{1,0:T(1,128)}', space=vmem, size = 0x12000, scoped, tag = 'internal scratch']
  %s0 = inlined_call_operand.vmem [shape: f32[56,24], index: 0, kind: input, shape index: {}]
  %s1 = inlined_call_operand.vmem [shape: f32[336,128], index: 1, kind: input, shape index: {}]
  %s2 = inlined_call_operand.hbm [shape: f32[2,30], index: 2, kind: output, shape index: {}]
  %s3 = sld [smem:[#allocation0]]
  $region18: #{deepant2d_forward.1} parent=0
    _
  %s5 = ssub.s32 1, %s3
  %s6 = scalar_select 0, %s5, %s3
  $region1: #{deepant2d_forward.1} parent=0
    #allocation2 [shape = 'u8[1024]{0}', space=vmem, size = 0x400, scoped, tag = 'output window, operand 0, single buffered']
    #allocation3 [shape = 's32[1]{0}', space=sflag, size = 0x4, scoped, tag = 'scoped memory for deepant2d_forward.1']
    %7 = vsyncpa [#allocation3], 0
    // Predicated region
    $region2: #{deepant2d_forward.1} parent=1 // pred_check
      _
    $region3: #{deepant2d_forward.1} parent=1 // pred_check_branch
      %9 = sbr.rel (0) target = $region5
    $region4: #{deepant2d_forward.1} parent=1 // pred_region
      _
    $region5: #{deepant2d_forward.1} parent=1 // pred_fallthru
      _
    // Predicated region
    $region6: #{deepant2d_forward.1} parent=1 // pred_check
      _
    $region7: #{deepant2d_forward.1} parent=1 // pred_check_branch
      %11 = sbr.rel (0) target = $region9
    $region8: #{deepant2d_forward.1} parent=1 // pred_region
      _
    $region9: #{deepant2d_forward.1} parent=1 // pred_fallthru
      _
    %v12 = vld [vmem:[%s1] sm:$0xff]
    %v13 = vld [vmem:[%s1 + $0x8] sm:$0xff]
    %v14 = vld [vmem:[%s1 + $0x10] sm:$0xff]
    %v15 = vld [vmem:[%s1 + $0x48] sm:$0xff]
    %v16 = vld [vmem:[%s1 + $0x50] sm:$0xff]
    %v17 = vld [vmem:[%s1 + $0x58] sm:$0xff]
    %v18 = vld [vmem:[%s1 + $0x60] sm:$0xff]
    %v19 = vld [vmem:[%s1 + $0x68] sm:$0xff]
    %v20 = vld [vmem:[%s1 + $0x70] sm:$0xff]
    %v21 = vld [vmem:[%s1 + $0x78] sm:$0xff]
    %v22 = vld [vmem:[%s1 + $0x80] sm:$0xff]
    %v23 = vld [vmem:[%s1 + $0x88] sm:$0xff]
    %v24 = vld [vmem:[%s1 + $0x90] sm:$0xff]
    %v25 = vld [vmem:[%s1 + $0x98] sm:$0xff]
    %v26 = vld [vmem:[%s1 + $0xa0] sm:$0xff]
    %v27 = vld [vmem:[%s1 + $0xa8] sm:$0xff]
    %v28 = vld [vmem:[%s1 + $0xb0] sm:$0xff]
    %v29 = vld [vmem:[%s1 + $0xb8] sm:$0xff]
    %v30 = vld [vmem:[%s1 + $0xc0] sm:$0xff]
    %v31 = vld [vmem:[%s1 + $0xc8] sm:$0xff]
    %v32 = vld [vmem:[%s1 + $0xd0] sm:$0xff]
    %v33 = vld [vmem:[%s1 + $0xd8] sm:$0xff]
    %v34 = vld [vmem:[%s1 + $0xe0] sm:$0xf]
    %v35 = vld [vmem:[%s1 + $0xe8] sm:$0xff]
    %v36 = vld [vmem:[%s1 + $0xf0] sm:$0xff]
    %v37 = vld [vmem:[%s1 + $0xf8] sm:$0xff]
    %v38 = vld [vmem:[%s1 + $0x100] sm:$0xf]
    %v39 = vld [vmem:[%s1 + $0x108] sm:$0xff]
    %v40 = vld [vmem:[%s1 + $0x110] sm:$0xff]
    %v41 = vld [vmem:[%s1 + $0x118] sm:$0xff]
    %v42 = vld [vmem:[%s1 + $0x120] sm:$0xf]
    %v43 = vld [vmem:[%s1 + $0x128] sm:$0xff]
    %v44 = vld [vmem:[%s1 + $0x130] sm:$0xf]
    %v45 = vld [vmem:[%s1 + $0x138] sm:$0xff]
    %v46 = vld [vmem:[%s1 + $0x140] sm:$0xf]
    %v47 = vld [vmem:[%s1 + $0x148] sm:$0xf]
    %v48 = vld [vmem:[%s0] sm:$0xff]
    %v49 = vld [vmem:[%s0 + $0x8] sm:$0xff]
    %v50 = vld [vmem:[%s0 + $0x10] sm:$0xff]
    %v51 = vld [vmem:[%s0 + $0x18] sm:$0xff]
    %v52 = vld [vmem:[%s0 + $0x20] sm:$0xff]
    %v53 = vld [vmem:[%s0 + $0x28] sm:$0xff]
    %v54 = vld [vmem:[%s0 + $0x30] sm:$0xff]
    %v55 = vlaneseq
    %v56 = vshrl.u32 %v55, 7
    %v57 = vsub.s32 0, %v56
    %v58 = vrot.slane %v47, %v57
    %vm59 = vcmask 195584
    %v61 = vsel %vm59, %v48, 0
    %v64 = vsel %vm59, %v49, 0
    %v67 = vsel %vm59, %v50, 0
    %v70 = vsel %vm59, %v51, 0
    %v73 = vsel %vm59, %v52, 0
    %v76 = vsel %vm59, %v53, 0
    %v79 = vsel %vm59, %v54, 0
    %81 = vmatprep.subr.mxu0 0.0
    %82 = vmatpush1.msra.mxu0 %v12
    %83 = vmatprep.subr.mxu0 0.0
    %84 = vmatpush1.msra.mxu0 %v13
    %85 = vmatprep.subr.mxu0 0.0
    %86 = vmatpush1.msra.mxu0 %v14
    %87 = vmatprep.subr.mxu0 0.0
    %88 = vmatpush1.msra.mxu0 0.0
    %89 = vmatprep.subr.mxu0 0.0
    %90 = vmatpush1.msra.mxu0 0.0
    %91 = vmatprep.subr.mxu0 0.0
    %92 = vmatpush1.msra.mxu0 0.0
    %93 = vmatprep.subr.mxu0 0.0
    %94 = vmatpush1.msra.mxu0 0.0
    %95 = vmatprep.subr.mxu0 0.0
    %96 = vmatpush1.msra.mxu0 0.0
    %97 = vmatprep.subr.mxu0 0.0
    %98 = vmatpush1.msra.mxu0 0.0
    %99 = vmatprep.subr.mxu0 0.0
    %100 = vmatpush1.msra.mxu0 0.0
    %101 = vmatprep.subr.mxu0 0.0
    %102 = vmatpush1.msra.mxu0 0.0
    %103 = vmatprep.subr.mxu0 0.0
    %104 = vmatpush1.msra.mxu0 0.0
    %105 = vmatprep.subr.mxu0 0.0
    %106 = vmatpush1.msra.mxu0 0.0
    %107 = vmatprep.subr.mxu0 0.0
    %108 = vmatpush1.msra.mxu0 0.0
    %109 = vmatprep.subr.mxu0 0.0
    %110 = vmatpush1.msra.mxu0 0.0
    %111 = vmatprep.subr.mxu0 0.0
    %112 = vmatpush1.msra.mxu0 0.0
    %113 = vmatprep.subr.mxu0 0.0
    %114 = vmatpush1.msra.mxu0 0.0
    %115 = vmatprep.subr.mxu0 0.0
    %116 = vmatpush1.msra.mxu0 0.0
    %117 = vmatprep.subr.mxu0 0.0
    %118 = vmatpush1.msra.mxu0 0.0
    %119 = vmatprep.subr.mxu0 0.0
    %120 = vmatpush1.msra.mxu0 0.0
    %121 = vmatprep.subr.mxu0 0.0
    %122 = vmatpush1.msra.mxu0 0.0
    %123 = vmatprep.subr.mxu0 0.0
    %124 = vmatpush1.msra.mxu0 0.0
    %125 = vmatprep.subr.mxu0 0.0
    %126 = vmatpush1.msra.mxu0 0.0
    %127 = vmatprep.subr.mxu0 0.0
    %128 = vmatpush1.msra.mxu0 0.0
    %129 = vmatprep.subr.mxu0 0.0
    %130 = vmatpush1.msra.mxu0 0.0
    %131 = vmatprep.subr.mxu0 0.0
    %132 = vmatpush1.msra.mxu0 0.0
    %133 = vmatprep.subr.mxu0 0.0
    %134 = vmatpush1.msra.mxu0 0.0
    %135 = vmatprep.subr.mxu0 0.0
    %136 = vmatpush1.msra.mxu0 0.0
    %137 = vmatprep.subr.mxu0 0.0
    %138 = vmatpush1.msra.mxu0 0.0
    %139 = vmatprep.subr.mxu0 0.0
    %140 = vmatpush1.msra.mxu0 0.0
    %141 = vmatprep.subr.mxu0 0.0
    %142 = vmatpush1.msra.mxu0 0.0
    %143 = vmatprep.subr.mxu0 0.0
    %144 = vmatpush1.msra.mxu0 0.0
    %145 = vmatprep.mubr.f32.mxu0 0.0
    %146 = vmatmul.mubr.f32.gmra.mrb[0].mxu0 %v61
    %v147 = vpop.f32.mrb[0].mxu0
    %v148 = vadd.f32 %v58, %v147
    %v149 = vpop.f32.mrb[0].mxu0
    %150 = vmatprep.mubr.f32.mxu0 0.0
    %151 = vmatmul.mubr.f32.gmra.mrb[0].mxu0 %v64
    %v152 = vpop.f32.mrb[0].mxu0
    %v153 = vadd.f32 %v58, %v152
    %v154 = vpop.f32.mrb[0].mxu0
    %155 = vmatprep.mubr.f32.mxu0 0.0
    %156 = vmatmul.mubr.f32.gmra.mrb[0].mxu0 %v67
    %v157 = vpop.f32.mrb[0].mxu0
    %v158 = vadd.f32 %v58, %v157
    %v159 = vpop.f32.mrb[0].mxu0
    %160 = vmatprep.mubr.f32.mxu0 0.0
    %161 = vmatmul.mubr.f32.gmra.mrb[0].mxu0 %v70
    %v162 = vpop.f32.mrb[0].mxu0
    %v163 = vadd.f32 %v58, %v162
    %v164 = vpop.f32.mrb[0].mxu0
    %165 = vmatprep.mubr.f32.mxu0 0.0
    %166 = vmatmul.mubr.f32.gmra.mrb[0].mxu0 %v73
    %v167 = vpop.f32.mrb[0].mxu0
    %v168 = vadd.f32 %v58, %v167
    %v169 = vpop.f32.mrb[0].mxu0
    %170 = vmatprep.mubr.f32.mxu0 0.0
    %171 = vmatmul.mubr.f32.gmra.mrb[0].mxu0 %v76
    %v172 = vpop.f32.mrb[0].mxu0
    %v173 = vadd.f32 %v58, %v172
    %v174 = vpop.f32.mrb[0].mxu0
    %175 = vmatprep.mubr.f32.mxu0 0.0
    %176 = vmatmul.mubr.f32.gmra.mrb[0].mxu0 %v79
    %v177 = vpop.f32.mrb[0].mxu0
    %v178 = vadd.f32 %v58, %v177
    %v179 = vpop.f32.mrb[0].mxu0
    %180 = vdwg.mxu0
    %v181 = vmax.f32 %v148, 0.0
    %v182 = vmax.f32 %v153, 0.0
    %v183 = vmax.f32 %v158, 0.0
    %v184 = vmax.f32 %v163, 0.0
    %v185 = vmax.f32 %v168, 0.0
    %v186 = vmax.f32 %v173, 0.0
    %v187 = vmax.f32 %v178, 0.0
    %vm188 = vcmask 457728
    %v190 = vsel %vm188, %v35, 0
    %v193 = vsel %vm188, %v36, 0
    %v196 = vsel %vm188, %v37, 0
    %v199 = vsel %vm188, %v38, 0
    %201 = vmatprep.subr.mxu0 0.0
    %202 = vmatpush1.msra.mxu0 %v181
    %203 = vmatprep.subr.mxu0 0.0
    %204 = vmatpush1.msra.mxu0 %v182
    %205 = vmatprep.subr.mxu0 0.0
    %206 = vmatpush1.msra.mxu0 %v183
    %207 = vmatprep.subr.mxu0 0.0
    %208 = vmatpush1.msra.mxu0 %v184
    %209 = vmatprep.subr.mxu0 0.0
    %210 = vmatpush1.msra.mxu0 %v185
    %211 = vmatprep.subr.mxu0 0.0
    %212 = vmatpush1.msra.mxu0 %v186
    %213 = vmatprep.subr.mxu0 0.0
    %214 = vmatpush1.msra.mxu0 %v187
    %215 = vmatprep.subr.mxu0 0.0
    %216 = vmatpush1.msra.mxu0 0.0
    %217 = vmatprep.subr.mxu0 0.0
    %218 = vmatpush1.msra.mxu0 0.0
    %219 = vmatprep.subr.mxu0 0.0
    %220 = vmatpush1.msra.mxu0 0.0
    %221 = vmatprep.subr.mxu0 0.0
    %222 = vmatpush1.msra.mxu0 0.0
    %223 = vmatprep.subr.mxu0 0.0
    %224 = vmatpush1.msra.mxu0 0.0
    %225 = vmatprep.subr.mxu0 0.0
    %226 = vmatpush1.msra.mxu0 0.0
    %227 = vmatprep.subr.mxu0 0.0
    %228 = vmatpush1.msra.mxu0 0.0
    %229 = vmatprep.subr.mxu0 0.0
    %230 = vmatpush1.msra.mxu0 0.0
    %231 = vmatprep.subr.mxu0 0.0
    %232 = vmatpush1.msra.mxu0 0.0
    %233 = vmatprep.subr.mxu0 0.0
    %234 = vmatpush1.msra.mxu0 0.0
    %235 = vmatprep.subr.mxu0 0.0
    %236 = vmatpush1.msra.mxu0 0.0
    %237 = vmatprep.subr.mxu0 0.0
    %238 = vmatpush1.msra.mxu0 0.0
    %239 = vmatprep.subr.mxu0 0.0
    %240 = vmatpush1.msra.mxu0 0.0
    %241 = vmatprep.subr.mxu0 0.0
    %242 = vmatpush1.msra.mxu0 0.0
    %243 = vmatprep.subr.mxu0 0.0
    %244 = vmatpush1.msra.mxu0 0.0
    %245 = vmatprep.subr.mxu0 0.0
    %246 = vmatpush1.msra.mxu0 0.0
    %247 = vmatprep.subr.mxu0 0.0
    %248 = vmatpush1.msra.mxu0 0.0
    %249 = vmatprep.subr.mxu0 0.0
    %250 = vmatpush1.msra.mxu0 0.0
    %251 = vmatprep.subr.mxu0 0.0
    %252 = vmatpush1.msra.mxu0 0.0
    %253 = vmatprep.subr.mxu0 0.0
    %254 = vmatpush1.msra.mxu0 0.0
    %255 = vmatprep.subr.mxu0 0.0
    %256 = vmatpush1.msra.mxu0 0.0
    %257 = vmatprep.subr.mxu0 0.0
    %258 = vmatpush1.msra.mxu0 0.0
    %259 = vmatprep.subr.mxu0 0.0
    %260 = vmatpush1.msra.mxu0 0.0
    %261 = vmatprep.subr.mxu0 0.0
    %262 = vmatpush1.msra.mxu0 0.0
    %263 = vmatprep.subr.mxu0 0.0
    %264 = vmatpush1.msra.mxu0 0.0
    %265 = vmatprep.mubr.f32.mxu0 0.0
    %266 = vmatmul.mubr.f32.gmra.mrb[0].mxu0 %v190
    %v267 = vpop.f32.mrb[0].mxu0
    %v268 = vadd.f32 0.0, %v267
    %v269 = vpop.f32.mrb[0].mxu0
    %270 = vmatprep.mubr.f32.mxu0 0.0
    %271 = vmatmul.mubr.f32.gmra.mrb[0].mxu0 %v193
    %v272 = vpop.f32.mrb[0].mxu0
    %v273 = vadd.f32 0.0, %v272
    %v274 = vpop.f32.mrb[0].mxu0
    %275 = vmatprep.mubr.f32.mxu0 0.0
    %276 = vmatmul.mubr.f32.gmra.mrb[0].mxu0 %v196
    %v277 = vpop.f32.mrb[0].mxu0
    %v278 = vadd.f32 0.0, %v277
    %v279 = vpop.f32.mrb[0].mxu0
    %280 = vmatprep.mubr.f32.mxu0 0.0
    %281 = vmatmul.mubr.f32.gmra.mrb[0].mxu0 %v199
    %v282 = vpop.f32.mrb[0].mxu0
    %v283 = vadd.f32 0.0, %v282
    %v284 = vpop.f32.mrb[0].mxu0
    %285 = vdwg.mxu0
    %v287 = vsel %vm188, %v39, 0
    %v290 = vsel %vm188, %v40, 0
    %v293 = vsel %vm188, %v41, 0
    %v296 = vsel %vm188, %v42, 0
    %298 = vmatprep.subr.mxu0 0.0
    %299 = vmatpush1.msra.mxu0 %v181
    %300 = vmatprep.subr.mxu0 0.0
    %301 = vmatpush1.msra.mxu0 %v182
    %302 = vmatprep.subr.mxu0 0.0
    %303 = vmatpush1.msra.mxu0 %v183
    %304 = vmatprep.subr.mxu0 0.0
    %305 = vmatpush1.msra.mxu0 %v184
    %306 = vmatprep.subr.mxu0 0.0
    %307 = vmatpush1.msra.mxu0 %v185
    %308 = vmatprep.subr.mxu0 0.0
    %309 = vmatpush1.msra.mxu0 %v186
    %310 = vmatprep.subr.mxu0 0.0
    %311 = vmatpush1.msra.mxu0 %v187
    %312 = vmatprep.subr.mxu0 0.0
    %313 = vmatpush1.msra.mxu0 0.0
    %314 = vmatprep.subr.mxu0 0.0
    %315 = vmatpush1.msra.mxu0 0.0
    %316 = vmatprep.subr.mxu0 0.0
    %317 = vmatpush1.msra.mxu0 0.0
    %318 = vmatprep.subr.mxu0 0.0
    %319 = vmatpush1.msra.mxu0 0.0
    %320 = vmatprep.subr.mxu0 0.0
    %321 = vmatpush1.msra.mxu0 0.0
    %322 = vmatprep.subr.mxu0 0.0
    %323 = vmatpush1.msra.mxu0 0.0
    %324 = vmatprep.subr.mxu0 0.0
    %325 = vmatpush1.msra.mxu0 0.0
    %326 = vmatprep.subr.mxu0 0.0
    %327 = vmatpush1.msra.mxu0 0.0
    %328 = vmatprep.subr.mxu0 0.0
    %329 = vmatpush1.msra.mxu0 0.0
    %330 = vmatprep.subr.mxu0 0.0
    %331 = vmatpush1.msra.mxu0 0.0
    %332 = vmatprep.subr.mxu0 0.0
    %333 = vmatpush1.msra.mxu0 0.0
    %334 = vmatprep.subr.mxu0 0.0
    %335 = vmatpush1.msra.mxu0 0.0
    %336 = vmatprep.subr.mxu0 0.0
    %337 = vmatpush1.msra.mxu0 0.0
    %338 = vmatprep.subr.mxu0 0.0
    %339 = vmatpush1.msra.mxu0 0.0
    %340 = vmatprep.subr.mxu0 0.0
    %341 = vmatpush1.msra.mxu0 0.0
    %342 = vmatprep.subr.mxu0 0.0
    %343 = vmatpush1.msra.mxu0 0.0
    %344 = vmatprep.subr.mxu0 0.0
    %345 = vmatpush1.msra.mxu0 0.0
    %346 = vmatprep.subr.mxu0 0.0
    %347 = vmatpush1.msra.mxu0 0.0
    %348 = vmatprep.subr.mxu0 0.0
    %349 = vmatpush1.msra.mxu0 0.0
    %350 = vmatprep.subr.mxu0 0.0
    %351 = vmatpush1.msra.mxu0 0.0
    %352 = vmatprep.subr.mxu0 0.0
    %353 = vmatpush1.msra.mxu0 0.0
    %354 = vmatprep.subr.mxu0 0.0
    %355 = vmatpush1.msra.mxu0 0.0
    %356 = vmatprep.subr.mxu0 0.0
    %357 = vmatpush1.msra.mxu0 0.0
    %358 = vmatprep.subr.mxu0 0.0
    %359 = vmatpush1.msra.mxu0 0.0
    %360 = vmatprep.subr.mxu0 0.0
    %361 = vmatpush1.msra.mxu0 0.0
    %362 = vmatprep.mubr.f32.mxu0 0.0
    %363 = vmatmul.mubr.f32.gmra.mrb[0].mxu0 %v287
    %v364 = vpop.f32.mrb[0].mxu0
    %v365 = vadd.f32 0.0, %v364
    %v366 = vpop.f32.mrb[0].mxu0
    %367 = vmatprep.mubr.f32.mxu0 0.0
    %368 = vmatmul.mubr.f32.gmra.mrb[0].mxu0 %v290
    %v369 = vpop.f32.mrb[0].mxu0
    %v370 = vadd.f32 0.0, %v369
    %v371 = vpop.f32.mrb[0].mxu0
    %372 = vmatprep.mubr.f32.mxu0 0.0
    %373 = vmatmul.mubr.f32.gmra.mrb[0].mxu0 %v293
    %v374 = vpop.f32.mrb[0].mxu0
    %v375 = vadd.f32 0.0, %v374
    %v376 = vpop.f32.mrb[0].mxu0
    %377 = vmatprep.mubr.f32.mxu0 0.0
    %378 = vmatmul.mubr.f32.gmra.mrb[0].mxu0 %v296
    %v379 = vpop.f32.mrb[0].mxu0
    %v380 = vadd.f32 0.0, %v379
    %v381 = vpop.f32.mrb[0].mxu0
    %382 = vdwg.mxu0
    %v383 = vmax.f32 %v268, %v365
    %v384 = vmax.f32 %v273, %v370
    %v385 = vmax.f32 %v278, %v375
    %v386 = vmax.f32 %v283, %v380
    %v387 = vld [vmem:[%s1 + $0x18] sm:$0xff]
    %v388 = vld [vmem:[%s1 + $0x20] sm:$0xff]
    %v389 = vld [vmem:[%s1 + $0x28] sm:$0xff]
    %v390 = vld [vmem:[%s1 + $0x30] sm:$0xff]
    %vm395 = vcmask 1046528
    %v396 = vrot.slane %v383, 1
    %v397 = vrot.slane %v384, 1
    %v398 = vsel %vm395, %v396, %v397
    %v399 = vrot.slane %v385, 1
    %v400 = vsel %vm395, %v397, %v399
    %v401 = vrot.slane %v386, 1
    %v402 = vsel %vm395, %v399, %v401
    %vm403 = vcmask 130048
    %v404 = vsel %vm403, %v398, 0
    %v406 = vsel %vm403, %v400, 0
    %v408 = vsel %vm403, %v402, 0
    %v410 = vsel %vm403, %v401, 0
    %412 = vmatprep.subr.mxu0 0.0
    %413 = vmatpush1.msra.mxu0 %v389
    %414 = vmatprep.subr.mxu0 0.0
    %415 = vmatpush1.msra.mxu0 %v390
    %416 = vmatprep.subr.mxu0 0.0
    %417 = vmatpush1.msra.mxu0 0.0
    %418 = vmatprep.subr.mxu0 0.0
    %419 = vmatpush1.msra.mxu0 0.0
    %420 = vmatprep.subr.mxu0 0.0
    %421 = vmatpush1.msra.mxu0 0.0
    %422 = vmatprep.subr.mxu0 0.0
    %423 = vmatpush1.msra.mxu0 0.0
    %424 = vmatprep.subr.mxu0 0.0
    %425 = vmatpush1.msra.mxu0 0.0
    %426 = vmatprep.subr.mxu0 0.0
    %427 = vmatpush1.msra.mxu0 0.0
    %428 = vmatprep.subr.mxu0 0.0
    %429 = vmatpush1.msra.mxu0 0.0
    %430 = vmatprep.subr.mxu0 0.0
    %431 = vmatpush1.msra.mxu0 0.0
    %432 = vmatprep.subr.mxu0 0.0
    %433 = vmatpush1.msra.mxu0 0.0
    %434 = vmatprep.subr.mxu0 0.0
    %435 = vmatpush1.msra.mxu0 0.0
    %436 = vmatprep.subr.mxu0 0.0
    %437 = vmatpush1.msra.mxu0 0.0
    %438 = vmatprep.subr.mxu0 0.0
    %439 = vmatpush1.msra.mxu0 0.0
    %440 = vmatprep.subr.mxu0 0.0
    %441 = vmatpush1.msra.mxu0 0.0
    %442 = vmatprep.subr.mxu0 0.0
    %443 = vmatpush1.msra.mxu0 0.0
    %444 = vmatprep.subr.mxu0 0.0
    %445 = vmatpush1.msra.mxu0 0.0
    %446 = vmatprep.subr.mxu0 0.0
    %447 = vmatpush1.msra.mxu0 0.0
    %448 = vmatprep.subr.mxu0 0.0
    %449 = vmatpush1.msra.mxu0 0.0
    %450 = vmatprep.subr.mxu0 0.0
    %451 = vmatpush1.msra.mxu0 0.0
    %452 = vmatprep.subr.mxu0 0.0
    %453 = vmatpush1.msra.mxu0 0.0
    %454 = vmatprep.subr.mxu0 0.0
    %455 = vmatpush1.msra.mxu0 0.0
    %456 = vmatprep.subr.mxu0 0.0
    %457 = vmatpush1.msra.mxu0 0.0
    %458 = vmatprep.subr.mxu0 0.0
    %459 = vmatpush1.msra.mxu0 0.0
    %460 = vmatprep.subr.mxu0 0.0
    %461 = vmatpush1.msra.mxu0 0.0
    %462 = vmatprep.subr.mxu0 0.0
    %463 = vmatpush1.msra.mxu0 0.0
    %464 = vmatprep.subr.mxu0 0.0
    %465 = vmatpush1.msra.mxu0 0.0
    %466 = vmatprep.subr.mxu0 0.0
    %467 = vmatpush1.msra.mxu0 0.0
    %468 = vmatprep.subr.mxu0 0.0
    %469 = vmatpush1.msra.mxu0 0.0
    %470 = vmatprep.subr.mxu0 0.0
    %471 = vmatpush1.msra.mxu0 0.0
    %472 = vmatprep.subr.mxu0 0.0
    %473 = vmatpush1.msra.mxu0 0.0
    %474 = vmatprep.subr.mxu0 0.0
    %475 = vmatpush1.msra.mxu0 0.0
    %476 = vmatprep.mubr.f32.mxu0 0.0
    %477 = vmatmul.mubr.f32.gmra.mrb[0].mxu0 %v404
    %v478 = vpop.f32.mrb[0].mxu0
    %v479 = vadd.f32 0.0, %v478
    %v480 = vpop.f32.mrb[0].mxu0
    %481 = vmatprep.mubr.f32.mxu0 0.0
    %482 = vmatmul.mubr.f32.gmra.mrb[0].mxu0 %v406
    %v483 = vpop.f32.mrb[0].mxu0
    %v484 = vadd.f32 0.0, %v483
    %v485 = vpop.f32.mrb[0].mxu0
    %486 = vmatprep.mubr.f32.mxu0 0.0
    %487 = vmatmul.mubr.f32.gmra.mrb[0].mxu0 %v408
    %v488 = vpop.f32.mrb[0].mxu0
    %v489 = vadd.f32 0.0, %v488
    %v490 = vpop.f32.mrb[0].mxu0
    %491 = vmatprep.mubr.f32.mxu0 0.0
    %492 = vmatmul.mubr.f32.gmra.mrb[0].mxu0 %v410
    %v493 = vpop.f32.mrb[0].mxu0
    %v494 = vadd.f32 0.0, %v493
    %v495 = vpop.f32.mrb[0].mxu0
    %496 = vdwg.mxu0
    %v497 = vsel %vm403, %v383, 0
    %v499 = vsel %vm403, %v384, 0
    %v501 = vsel %vm403, %v385, 0
    %v503 = vsel %vm403, %v386, 0
    %505 = vmatprep.subr.mxu0 0.0
    %506 = vmatpush1.msra.mxu0 %v387
    %507 = vmatprep.subr.mxu0 0.0
    %508 = vmatpush1.msra.mxu0 %v388
    %509 = vmatprep.subr.mxu0 0.0
    %510 = vmatpush1.msra.mxu0 0.0
    %511 = vmatprep.subr.mxu0 0.0
    %512 = vmatpush1.msra.mxu0 0.0
    %513 = vmatprep.subr.mxu0 0.0
    %514 = vmatpush1.msra.mxu0 0.0
    %515 = vmatprep.subr.mxu0 0.0
    %516 = vmatpush1.msra.mxu0 0.0
    %517 = vmatprep.subr.mxu0 0.0
    %518 = vmatpush1.msra.mxu0 0.0
    %519 = vmatprep.subr.mxu0 0.0
    %520 = vmatpush1.msra.mxu0 0.0
    %521 = vmatprep.subr.mxu0 0.0
    %522 = vmatpush1.msra.mxu0 0.0
    %523 = vmatprep.subr.mxu0 0.0
    %524 = vmatpush1.msra.mxu0 0.0
    %525 = vmatprep.subr.mxu0 0.0
    %526 = vmatpush1.msra.mxu0 0.0
    %527 = vmatprep.subr.mxu0 0.0
    %528 = vmatpush1.msra.mxu0 0.0
    %529 = vmatprep.subr.mxu0 0.0
    %530 = vmatpush1.msra.mxu0 0.0
    %531 = vmatprep.subr.mxu0 0.0
    %532 = vmatpush1.msra.mxu0 0.0
    %533 = vmatprep.subr.mxu0 0.0
    %534 = vmatpush1.msra.mxu0 0.0
    %535 = vmatprep.subr.mxu0 0.0
    %536 = vmatpush1.msra.mxu0 0.0
    %537 = vmatprep.subr.mxu0 0.0
    %538 = vmatpush1.msra.mxu0 0.0
    %539 = vmatprep.subr.mxu0 0.0
    %540 = vmatpush1.msra.mxu0 0.0
    %541 = vmatprep.subr.mxu0 0.0
    %542 = vmatpush1.msra.mxu0 0.0
    %543 = vmatprep.subr.mxu0 0.0
    %544 = vmatpush1.msra.mxu0 0.0
    %545 = vmatprep.subr.mxu0 0.0
    %546 = vmatpush1.msra.mxu0 0.0
    %547 = vmatprep.subr.mxu0 0.0
    %548 = vmatpush1.msra.mxu0 0.0
    %549 = vmatprep.subr.mxu0 0.0
    %550 = vmatpush1.msra.mxu0 0.0
    %551 = vmatprep.subr.mxu0 0.0
    %552 = vmatpush1.msra.mxu0 0.0
    %553 = vmatprep.subr.mxu0 0.0
    %554 = vmatpush1.msra.mxu0 0.0
    %555 = vmatprep.subr.mxu0 0.0
    %556 = vmatpush1.msra.mxu0 0.0
    %557 = vmatprep.subr.mxu0 0.0
    %558 = vmatpush1.msra.mxu0 0.0
    %559 = vmatprep.subr.mxu0 0.0
    %560 = vmatpush1.msra.mxu0 0.0
    %561 = vmatprep.subr.mxu0 0.0
    %562 = vmatpush1.msra.mxu0 0.0
    %563 = vmatprep.subr.mxu0 0.0
    %564 = vmatpush1.msra.mxu0 0.0
    %565 = vmatprep.subr.mxu0 0.0
    %566 = vmatpush1.msra.mxu0 0.0
    %567 = vmatprep.subr.mxu0 0.0
    %568 = vmatpush1.msra.mxu0 0.0
    %569 = vmatprep.mubr.f32.mxu0 0.0
    %570 = vmatmul.mubr.f32.gmra.mrb[0].mxu0 %v497
    %v571 = vpop.f32.mrb[0].mxu0
    %v572 = vadd.f32 %v479, %v571
    %v573 = vpop.f32.mrb[0].mxu0
    %574 = vmatprep.mubr.f32.mxu0 0.0
    %575 = vmatmul.mubr.f32.gmra.mrb[0].mxu0 %v499
    %v576 = vpop.f32.mrb[0].mxu0
    %v577 = vadd.f32 %v484, %v576
    %v578 = vpop.f32.mrb[0].mxu0
    %579 = vmatprep.mubr.f32.mxu0 0.0
    %580 = vmatmul.mubr.f32.gmra.mrb[0].mxu0 %v501
    %v581 = vpop.f32.mrb[0].mxu0
    %v582 = vadd.f32 %v489, %v581
    %v583 = vpop.f32.mrb[0].mxu0
    %584 = vmatprep.mubr.f32.mxu0 0.0
    %585 = vmatmul.mubr.f32.gmra.mrb[0].mxu0 %v503
    %v586 = vpop.f32.mrb[0].mxu0
    %v587 = vadd.f32 %v494, %v586
    %v588 = vpop.f32.mrb[0].mxu0
    %589 = vdwg.mxu0
    %v590 = vld [vmem:[%s1 + $0x38] sm:$0xff]
    %v591 = vld [vmem:[%s1 + $0x40] sm:$0xff]
    %vm592 = vcmask 1045504
    %v593 = vrot.slane %v383, 2
    %v594 = vrot.slane %v384, 2
    %v595 = vsel %vm592, %v593, %v594
    %v596 = vrot.slane %v385, 2
    %v597 = vsel %vm592, %v594, %v596
    %v598 = vrot.slane %v386, 2
    %v599 = vsel %vm592, %v596, %v598
    %v600 = vsel %vm403, %v595, 0
    %v602 = vsel %vm403, %v597, 0
    %v604 = vsel %vm403, %v599, 0
    %v606 = vsel %vm403, %v598, 0
    %608 = vmatprep.subr.mxu0 0.0
    %609 = vmatpush1.msra.mxu0 %v590
    %610 = vmatprep.subr.mxu0 0.0
    %611 = vmatpush1.msra.mxu0 %v591
    %612 = vmatprep.subr.mxu0 0.0
    %613 = vmatpush1.msra.mxu0 0.0
    %614 = vmatprep.subr.mxu0 0.0
    %615 = vmatpush1.msra.mxu0 0.0
    %616 = vmatprep.subr.mxu0 0.0
    %617 = vmatpush1.msra.mxu0 0.0
    %618 = vmatprep.subr.mxu0 0.0
    %619 = vmatpush1.msra.mxu0 0.0
    %620 = vmatprep.subr.mxu0 0.0
    %621 = vmatpush1.msra.mxu0 0.0
    %622 = vmatprep.subr.mxu0 0.0
    %623 = vmatpush1.msra.mxu0 0.0
    %624 = vmatprep.subr.mxu0 0.0
    %625 = vmatpush1.msra.mxu0 0.0
    %626 = vmatprep.subr.mxu0 0.0
    %627 = vmatpush1.msra.mxu0 0.0
    %628 = vmatprep.subr.mxu0 0.0
    %629 = vmatpush1.msra.mxu0 0.0
    %630 = vmatprep.subr.mxu0 0.0
    %631 = vmatpush1.msra.mxu0 0.0
    %632 = vmatprep.subr.mxu0 0.0
    %633 = vmatpush1.msra.mxu0 0.0
    %634 = vmatprep.subr.mxu0 0.0
    %635 = vmatpush1.msra.mxu0 0.0
    %636 = vmatprep.subr.mxu0 0.0
    %637 = vmatpush1.msra.mxu0 0.0
    %638 = vmatprep.subr.mxu0 0.0
    %639 = vmatpush1.msra.mxu0 0.0
    %640 = vmatprep.subr.mxu0 0.0
    %641 = vmatpush1.msra.mxu0 0.0
    %642 = vmatprep.subr.mxu0 0.0
    %643 = vmatpush1.msra.mxu0 0.0
    %644 = vmatprep.subr.mxu0 0.0
    %645 = vmatpush1.msra.mxu0 0.0
    %646 = vmatprep.subr.mxu0 0.0
    %647 = vmatpush1.msra.mxu0 0.0
    %648 = vmatprep.subr.mxu0 0.0
    %649 = vmatpush1.msra.mxu0 0.0
    %650 = vmatprep.subr.mxu0 0.0
    %651 = vmatpush1.msra.mxu0 0.0
    %652 = vmatprep.subr.mxu0 0.0
    %653 = vmatpush1.msra.mxu0 0.0
    %654 = vmatprep.subr.mxu0 0.0
    %655 = vmatpush1.msra.mxu0 0.0
    %656 = vmatprep.subr.mxu0 0.0
    %657 = vmatpush1.msra.mxu0 0.0
    %658 = vmatprep.subr.mxu0 0.0
    %659 = vmatpush1.msra.mxu0 0.0
    %660 = vmatprep.subr.mxu0 0.0
    %661 = vmatpush1.msra.mxu0 0.0
    %662 = vmatprep.subr.mxu0 0.0
    %663 = vmatpush1.msra.mxu0 0.0
    %664 = vmatprep.subr.mxu0 0.0
    %665 = vmatpush1.msra.mxu0 0.0
    %666 = vmatprep.subr.mxu0 0.0
    %667 = vmatpush1.msra.mxu0 0.0
    %668 = vmatprep.subr.mxu0 0.0
    %669 = vmatpush1.msra.mxu0 0.0
    %670 = vmatprep.subr.mxu0 0.0
    %671 = vmatpush1.msra.mxu0 0.0
    %672 = vmatprep.mubr.f32.mxu0 0.0
    %673 = vmatmul.mubr.f32.gmra.mrb[0].mxu0 %v600
    %v674 = vpop.f32.mrb[0].mxu0
    %v675 = vadd.f32 0.0, %v674
    %v676 = vpop.f32.mrb[0].mxu0
    %677 = vmatprep.mubr.f32.mxu0 0.0
    %678 = vmatmul.mubr.f32.gmra.mrb[0].mxu0 %v602
    %v679 = vpop.f32.mrb[0].mxu0
    %v680 = vadd.f32 0.0, %v679
    %v681 = vpop.f32.mrb[0].mxu0
    %682 = vmatprep.mubr.f32.mxu0 0.0
    %683 = vmatmul.mubr.f32.gmra.mrb[0].mxu0 %v604
    %v684 = vpop.f32.mrb[0].mxu0
    %v685 = vadd.f32 0.0, %v684
    %v686 = vpop.f32.mrb[0].mxu0
    %687 = vmatprep.mubr.f32.mxu0 0.0
    %688 = vmatmul.mubr.f32.gmra.mrb[0].mxu0 %v606
    %v689 = vpop.f32.mrb[0].mxu0
    %v690 = vadd.f32 0.0, %v689
    %v691 = vpop.f32.mrb[0].mxu0
    %692 = vdwg.mxu0
    %v693 = vadd.f32 %v572, %v675
    %v694 = vadd.f32 %v577, %v680
    %v695 = vadd.f32 %v582, %v685
    %v696 = vadd.f32 %v587, %v690
    %v697 = vlaneseq
    %v698 = vshrl.u32 %v697, 7
    %v699 = vsub.s32 1, %v698
    %v700 = vrot.slane %v47, %v699
    %v701 = vadd.f32 %v693, %v700
    %v702 = vadd.f32 %v694, %v700
    %v703 = vadd.f32 %v695, %v700
    %v704 = vadd.f32 %v696, %v700
    %v705 = vmax.f32 %v701, 0.0
    %v706 = vmax.f32 %v702, 0.0
    %v707 = vmax.f32 %v703, 0.0
    %v708 = vmax.f32 %v704, 0.0
    %vm709 = vcmask 211968
    %v711 = vsel %vm709, %v43, 0
    %v714 = vsel %vm709, %v44, 0
    %vm716 = vcmask 1041408
    %v718 = vsel %vm716, %v708, 0
    %720 = vmatprep.subr.mxu0 0.0
    %721 = vmatpush1.msra.mxu0 %v705
    %722 = vmatprep.subr.mxu0 0.0
    %723 = vmatpush1.msra.mxu0 %v706
    %724 = vmatprep.subr.mxu0 0.0
    %725 = vmatpush1.msra.mxu0 %v707
    %726 = vmatprep.subr.mxu0 0.0
    %727 = vmatpush1.msra.mxu0 %v718
    %728 = vmatprep.subr.mxu0 0.0
    %729 = vmatpush1.msra.mxu0 0.0
    %730 = vmatprep.subr.mxu0 0.0
    %731 = vmatpush1.msra.mxu0 0.0
    %732 = vmatprep.subr.mxu0 0.0
    %733 = vmatpush1.msra.mxu0 0.0
    %734 = vmatprep.subr.mxu0 0.0
    %735 = vmatpush1.msra.mxu0 0.0
    %736 = vmatprep.subr.mxu0 0.0
    %737 = vmatpush1.msra.mxu0 0.0
    %738 = vmatprep.subr.mxu0 0.0
    %739 = vmatpush1.msra.mxu0 0.0
    %740 = vmatprep.subr.mxu0 0.0
    %741 = vmatpush1.msra.mxu0 0.0
    %742 = vmatprep.subr.mxu0 0.0
    %743 = vmatpush1.msra.mxu0 0.0
    %744 = vmatprep.subr.mxu0 0.0
    %745 = vmatpush1.msra.mxu0 0.0
    %746 = vmatprep.subr.mxu0 0.0
    %747 = vmatpush1.msra.mxu0 0.0
    %748 = vmatprep.subr.mxu0 0.0
    %749 = vmatpush1.msra.mxu0 0.0
    %750 = vmatprep.subr.mxu0 0.0
    %751 = vmatpush1.msra.mxu0 0.0
    %752 = vmatprep.subr.mxu0 0.0
    %753 = vmatpush1.msra.mxu0 0.0
    %754 = vmatprep.subr.mxu0 0.0
    %755 = vmatpush1.msra.mxu0 0.0
    %756 = vmatprep.subr.mxu0 0.0
    %757 = vmatpush1.msra.mxu0 0.0
    %758 = vmatprep.subr.mxu0 0.0
    %759 = vmatpush1.msra.mxu0 0.0
    %760 = vmatprep.subr.mxu0 0.0
    %761 = vmatpush1.msra.mxu0 0.0
    %762 = vmatprep.subr.mxu0 0.0
    %763 = vmatpush1.msra.mxu0 0.0
    %764 = vmatprep.subr.mxu0 0.0
    %765 = vmatpush1.msra.mxu0 0.0
    %766 = vmatprep.subr.mxu0 0.0
    %767 = vmatpush1.msra.mxu0 0.0
    %768 = vmatprep.subr.mxu0 0.0
    %769 = vmatpush1.msra.mxu0 0.0
    %770 = vmatprep.subr.mxu0 0.0
    %771 = vmatpush1.msra.mxu0 0.0
    %772 = vmatprep.subr.mxu0 0.0
    %773 = vmatpush1.msra.mxu0 0.0
    %774 = vmatprep.subr.mxu0 0.0
    %775 = vmatpush1.msra.mxu0 0.0
    %776 = vmatprep.subr.mxu0 0.0
    %777 = vmatpush1.msra.mxu0 0.0
    %778 = vmatprep.subr.mxu0 0.0
    %779 = vmatpush1.msra.mxu0 0.0
    %780 = vmatprep.subr.mxu0 0.0
    %781 = vmatpush1.msra.mxu0 0.0
    %782 = vmatprep.subr.mxu0 0.0
    %783 = vmatpush1.msra.mxu0 0.0
    %784 = vmatprep.mubr.f32.mxu0 0.0
    %785 = vmatmul.mubr.f32.gmra.mrb[0].mxu0 %v711
    %v786 = vpop.f32.mrb[0].mxu0
    %v787 = vadd.f32 0.0, %v786
    %v788 = vpop.f32.mrb[0].mxu0
    %789 = vmatprep.mubr.f32.mxu0 0.0
    %790 = vmatmul.mubr.f32.gmra.mrb[0].mxu0 %v714
    %v791 = vpop.f32.mrb[0].mxu0
    %v792 = vadd.f32 0.0, %v791
    %v793 = vpop.f32.mrb[0].mxu0
    %794 = vdwg.mxu0
    %v796 = vsel %vm709, %v45, 0
    %v799 = vsel %vm709, %v46, 0
    %801 = vmatprep.subr.mxu0 0.0
    %802 = vmatpush1.msra.mxu0 %v705
    %803 = vmatprep.subr.mxu0 0.0
    %804 = vmatpush1.msra.mxu0 %v706
    %805 = vmatprep.subr.mxu0 0.0
    %806 = vmatpush1.msra.mxu0 %v707
    %807 = vmatprep.subr.mxu0 0.0
    %808 = vmatpush1.msra.mxu0 %v718
    %809 = vmatprep.subr.mxu0 0.0
    %810 = vmatpush1.msra.mxu0 0.0
    %811 = vmatprep.subr.mxu0 0.0
    %812 = vmatpush1.msra.mxu0 0.0
    %813 = vmatprep.subr.mxu0 0.0
    %814 = vmatpush1.msra.mxu0 0.0
    %815 = vmatprep.subr.mxu0 0.0
    %816 = vmatpush1.msra.mxu0 0.0
    %817 = vmatprep.subr.mxu0 0.0
    %818 = vmatpush1.msra.mxu0 0.0
    %819 = vmatprep.subr.mxu0 0.0
    %820 = vmatpush1.msra.mxu0 0.0
    %821 = vmatprep.subr.mxu0 0.0
    %822 = vmatpush1.msra.mxu0 0.0
    %823 = vmatprep.subr.mxu0 0.0
    %824 = vmatpush1.msra.mxu0 0.0
    %825 = vmatprep.subr.mxu0 0.0
    %826 = vmatpush1.msra.mxu0 0.0
    %827 = vmatprep.subr.mxu0 0.0
    %828 = vmatpush1.msra.mxu0 0.0
    %829 = vmatprep.subr.mxu0 0.0
    %830 = vmatpush1.msra.mxu0 0.0
    %831 = vmatprep.subr.mxu0 0.0
    %832 = vmatpush1.msra.mxu0 0.0
    %833 = vmatprep.subr.mxu0 0.0
    %834 = vmatpush1.msra.mxu0 0.0
    %835 = vmatprep.subr.mxu0 0.0
    %836 = vmatpush1.msra.mxu0 0.0
    %837 = vmatprep.subr.mxu0 0.0
    %838 = vmatpush1.msra.mxu0 0.0
    %839 = vmatprep.subr.mxu0 0.0
    %840 = vmatpush1.msra.mxu0 0.0
    %841 = vmatprep.subr.mxu0 0.0
    %842 = vmatpush1.msra.mxu0 0.0
    %843 = vmatprep.subr.mxu0 0.0
    %844 = vmatpush1.msra.mxu0 0.0
    %845 = vmatprep.subr.mxu0 0.0
    %846 = vmatpush1.msra.mxu0 0.0
    %847 = vmatprep.subr.mxu0 0.0
    %848 = vmatpush1.msra.mxu0 0.0
    %849 = vmatprep.subr.mxu0 0.0
    %850 = vmatpush1.msra.mxu0 0.0
    %851 = vmatprep.subr.mxu0 0.0
    %852 = vmatpush1.msra.mxu0 0.0
    %853 = vmatprep.subr.mxu0 0.0
    %854 = vmatpush1.msra.mxu0 0.0
    %855 = vmatprep.subr.mxu0 0.0
    %856 = vmatpush1.msra.mxu0 0.0
    %857 = vmatprep.subr.mxu0 0.0
    %858 = vmatpush1.msra.mxu0 0.0
    %859 = vmatprep.subr.mxu0 0.0
    %860 = vmatpush1.msra.mxu0 0.0
    %861 = vmatprep.subr.mxu0 0.0
    %862 = vmatpush1.msra.mxu0 0.0
    %863 = vmatprep.subr.mxu0 0.0
    %864 = vmatpush1.msra.mxu0 0.0
    %865 = vmatprep.mubr.f32.mxu0 0.0
    %866 = vmatmul.mubr.f32.gmra.mrb[0].mxu0 %v796
    %v867 = vpop.f32.mrb[0].mxu0
    %v868 = vadd.f32 0.0, %v867
    %v869 = vpop.f32.mrb[0].mxu0
    %870 = vmatprep.mubr.f32.mxu0 0.0
    %871 = vmatmul.mubr.f32.gmra.mrb[0].mxu0 %v799
    %v872 = vpop.f32.mrb[0].mxu0
    %v873 = vadd.f32 0.0, %v872
    %v874 = vpop.f32.mrb[0].mxu0
    %875 = vdwg.mxu0
    %v876 = vmax.f32 %v787, %v868
    %v877 = vmax.f32 %v792, %v873
    %v879 = vrot.slane %v876, 2
    %880 = vrot.lane.b32.xlu0 %v879, 16
    %v881 = vpop.permute.xlu0 %880
    %v883 = vrot.slane %v876, 4
    %884 = vrot.lane.b32.xlu0 %v883, 32
    %v885 = vpop.permute.xlu0 %884
    %v887 = vrot.slane %v876, 6
    %888 = vrot.lane.b32.xlu0 %v887, 48
    %v889 = vpop.permute.xlu0 %888
    %892 = vrot.lane.b32.xlu0 %v877, 64
    %v893 = vpop.permute.xlu0 %892
    %v895 = vrot.slane %v877, 2
    %896 = vrot.lane.b32.xlu0 %v895, 80
    %v897 = vpop.permute.xlu0 %896
    %v899 = vsel %vm403, %v876, %v881
    %vm900 = vcmask 261120
    %v901 = vsel %vm900, %v899, %v885
    %vm902 = vcmask 392192
    %v903 = vsel %vm902, %v901, %v889
    %vm904 = vcmask 523264
    %v905 = vsel %vm904, %v903, %v893
    %vm906 = vcmask 654336
    %v907 = vsel %vm906, %v905, %v897
    %v908 = vlaneseq
    %v909 = vshrl.u32 %v908, 7
    %v910 = vsub.s32 2, %v909
    %v911 = vrot.slane %v47, %v910
    %vm912 = vcmask 785408
    %v914 = vsel %vm912, %v907, 0
    %916 = vmatprep.subr.mxu0 0.0
    %917 = vmatpush1.msra.mxu0 %v15
    %918 = vmatprep.subr.mxu0 0.0
    %919 = vmatpush1.msra.mxu0 %v16
    %920 = vmatprep.subr.mxu0 0.0
    %921 = vmatpush1.msra.mxu0 %v17
    %922 = vmatprep.subr.mxu0 0.0
    %923 = vmatpush1.msra.mxu0 %v18
    %924 = vmatprep.subr.mxu0 0.0
    %925 = vmatpush1.msra.mxu0 %v19
    %926 = vmatprep.subr.mxu0 0.0
    %927 = vmatpush1.msra.mxu0 %v20
    %928 = vmatprep.subr.mxu0 0.0
    %929 = vmatpush1.msra.mxu0 %v21
    %930 = vmatprep.subr.mxu0 0.0
    %931 = vmatpush1.msra.mxu0 %v22
    %932 = vmatprep.subr.mxu0 0.0
    %933 = vmatpush1.msra.mxu0 %v23
    %934 = vmatprep.subr.mxu0 0.0
    %935 = vmatpush1.msra.mxu0 %v24
    %936 = vmatprep.subr.mxu0 0.0
    %937 = vmatpush1.msra.mxu0 %v25
    %938 = vmatprep.subr.mxu0 0.0
    %939 = vmatpush1.msra.mxu0 %v26
    %940 = vmatprep.subr.mxu0 0.0
    %941 = vmatpush1.msra.mxu0 0.0
    %942 = vmatprep.subr.mxu0 0.0
    %943 = vmatpush1.msra.mxu0 0.0
    %944 = vmatprep.subr.mxu0 0.0
    %945 = vmatpush1.msra.mxu0 0.0
    %946 = vmatprep.subr.mxu0 0.0
    %947 = vmatpush1.msra.mxu0 0.0
    %948 = vmatprep.subr.mxu0 0.0
    %949 = vmatpush1.msra.mxu0 0.0
    %950 = vmatprep.subr.mxu0 0.0
    %951 = vmatpush1.msra.mxu0 0.0
    %952 = vmatprep.subr.mxu0 0.0
    %953 = vmatpush1.msra.mxu0 0.0
    %954 = vmatprep.subr.mxu0 0.0
    %955 = vmatpush1.msra.mxu0 0.0
    %956 = vmatprep.subr.mxu0 0.0
    %957 = vmatpush1.msra.mxu0 0.0
    %958 = vmatprep.subr.mxu0 0.0
    %959 = vmatpush1.msra.mxu0 0.0
    %960 = vmatprep.subr.mxu0 0.0
    %961 = vmatpush1.msra.mxu0 0.0
    %962 = vmatprep.subr.mxu0 0.0
    %963 = vmatpush1.msra.mxu0 0.0
    %964 = vmatprep.subr.mxu0 0.0
    %965 = vmatpush1.msra.mxu0 0.0
    %966 = vmatprep.subr.mxu0 0.0
    %967 = vmatpush1.msra.mxu0 0.0
    %968 = vmatprep.subr.mxu0 0.0
    %969 = vmatpush1.msra.mxu0 0.0
    %970 = vmatprep.subr.mxu0 0.0
    %971 = vmatpush1.msra.mxu0 0.0
    %972 = vmatprep.subr.mxu0 0.0
    %973 = vmatpush1.msra.mxu0 0.0
    %974 = vmatprep.subr.mxu0 0.0
    %975 = vmatpush1.msra.mxu0 0.0
    %976 = vmatprep.subr.mxu0 0.0
    %977 = vmatpush1.msra.mxu0 0.0
    %978 = vmatprep.subr.mxu0 0.0
    %979 = vmatpush1.msra.mxu0 0.0
    %980 = vmatprep.mubr.f32.mxu0 0.0
    %981 = vmatmul.mubr.f32.gmra.mrb[0].mxu0 %v914
    %v982 = vpop.f32.mrb[0].mxu0
    %v983 = vadd.f32 %v911, %v982
    %v984 = vpop.f32.mrb[0].mxu0
    %985 = vdwg.mxu0
    %v986 = vmax.f32 %v983, 0.0
    %v987 = vlaneseq
    %v988 = vshrl.u32 %v987, 7
    %v989 = vsub.s32 3, %v988
    %v990 = vrot.slane %v47, %v989
    %vm991 = vcmask 490496
    %v993 = vsel %vm991, %v986, 0
    %vm995 = vcmask 1043456
    %v997 = vsel %vm995, %v34, 0
    %999 = vmatprep.subr.mxu0 0.0
    %1000 = vmatpush1.msra.mxu0 %v27
    %1001 = vmatprep.subr.mxu0 0.0
    %1002 = vmatpush1.msra.mxu0 %v28
    %1003 = vmatprep.subr.mxu0 0.0
    %1004 = vmatpush1.msra.mxu0 %v29
    %1005 = vmatprep.subr.mxu0 0.0
    %1006 = vmatpush1.msra.mxu0 %v30
    %1007 = vmatprep.subr.mxu0 0.0
    %1008 = vmatpush1.msra.mxu0 %v31
    %1009 = vmatprep.subr.mxu0 0.0
    %1010 = vmatpush1.msra.mxu0 %v32
    %1011 = vmatprep.subr.mxu0 0.0
    %1012 = vmatpush1.msra.mxu0 %v33
    %1013 = vmatprep.subr.mxu0 0.0
    %1014 = vmatpush1.msra.mxu0 %v997
    %1015 = vmatprep.subr.mxu0 0.0
    %1016 = vmatpush1.msra.mxu0 0.0
    %1017 = vmatprep.subr.mxu0 0.0
    %1018 = vmatpush1.msra.mxu0 0.0
    %1019 = vmatprep.subr.mxu0 0.0
    %1020 = vmatpush1.msra.mxu0 0.0
    %1021 = vmatprep.subr.mxu0 0.0
    %1022 = vmatpush1.msra.mxu0 0.0
    %1023 = vmatprep.subr.mxu0 0.0
    %1024 = vmatpush1.msra.mxu0 0.0
    %1025 = vmatprep.subr.mxu0 0.0
    %1026 = vmatpush1.msra.mxu0 0.0
    %1027 = vmatprep.subr.mxu0 0.0
    %1028 = vmatpush1.msra.mxu0 0.0
    %1029 = vmatprep.subr.mxu0 0.0
    %1030 = vmatpush1.msra.mxu0 0.0
    %1031 = vmatprep.subr.mxu0 0.0
    %1032 = vmatpush1.msra.mxu0 0.0
    %1033 = vmatprep.subr.mxu0 0.0
    %1034 = vmatpush1.msra.mxu0 0.0
    %1035 = vmatprep.subr.mxu0 0.0
    %1036 = vmatpush1.msra.mxu0 0.0
    %1037 = vmatprep.subr.mxu0 0.0
    %1038 = vmatpush1.msra.mxu0 0.0
    %1039 = vmatprep.subr.mxu0 0.0
    %1040 = vmatpush1.msra.mxu0 0.0
    %1041 = vmatprep.subr.mxu0 0.0
    %1042 = vmatpush1.msra.mxu0 0.0
    %1043 = vmatprep.subr.mxu0 0.0
    %1044 = vmatpush1.msra.mxu0 0.0
    %1045 = vmatprep.subr.mxu0 0.0
    %1046 = vmatpush1.msra.mxu0 0.0
    %1047 = vmatprep.subr.mxu0 0.0
    %1048 = vmatpush1.msra.mxu0 0.0
    %1049 = vmatprep.subr.mxu0 0.0
    %1050 = vmatpush1.msra.mxu0 0.0
    %1051 = vmatprep.subr.mxu0 0.0
    %1052 = vmatpush1.msra.mxu0 0.0
    %1053 = vmatprep.subr.mxu0 0.0
    %1054 = vmatpush1.msra.mxu0 0.0
    %1055 = vmatprep.subr.mxu0 0.0
    %1056 = vmatpush1.msra.mxu0 0.0
    %1057 = vmatprep.subr.mxu0 0.0
    %1058 = vmatpush1.msra.mxu0 0.0
    %1059 = vmatprep.subr.mxu0 0.0
    %1060 = vmatpush1.msra.mxu0 0.0
    %1061 = vmatprep.subr.mxu0 0.0
    %1062 = vmatpush1.msra.mxu0 0.0
    %1063 = vmatprep.mubr.f32.mxu0 0.0
    %1064 = vmatmul.mubr.f32.gmra.mrb[0].mxu0 %v993
    %v1065 = vpop.f32.mrb[0].mxu0
    %v1066 = vadd.f32 %v990, %v1065
    %v1067 = vpop.f32.mrb[0].mxu0
    %1068 = vdwg.mxu0
    %vm1069 = vcmask 238592
    %1070 = vst.msk [vmem:[#allocation2] sm:$0x3] %vm1069, %v1066
    // Predicated region
    $region10: #{deepant2d_forward.1} parent=1 // pred_check
      _
    $region11: #{deepant2d_forward.1} parent=1 // pred_check_branch
      %1072 = sbr.rel (0) target = $region13
    $region12: #{deepant2d_forward.1} parent=1 // pred_region
      %s1074 = ssub.s32 32, 32
      %1075 = vsyncadd [#allocation3], %s1074
      %s1077 = sshll.u32 [#allocation2], 4
      %s1078 = int_to_ptr.vmem [resolvable:$true] %s1077
      %1080 = dma.vmem_to_hbm [thread:$0]  %s1078, 32, %s2, [#allocation3]
    $region13: #{deepant2d_forward.1} parent=1 // pred_fallthru
      _
    // Predicated region
    $region14: #{deepant2d_forward.1} parent=1 // pred_check
      _
    $region15: #{deepant2d_forward.1} parent=1 // pred_check_branch
      %1082 = sbr.rel (0) target = $region17
    $region16: #{deepant2d_forward.1} parent=1 // pred_region
      %1083 = dma.done [#allocation3], 32
    $region17: #{deepant2d_forward.1} parent=1 // pred_fallthru
      _
    %1084 = vsyncpa [#allocation3], 1

</llo_original>
